<compile_context>
chip_gen: v7x
topology: tpu7x:2x2x1
jax: 0.10.0
libtpu: 0.0.40
codegen_flags: <defaults>
</compile_context>

<pallas_src>
import jax
import jax.numpy as jnp
from jax.experimental import pallas as pl
from jax.experimental.pallas import tpu as pltpu

_LANE = 128
_F = 5             # feature width of the network
_MAX_TB = 131072   # lane-tile clamp (keeps double-buffered VMEM ~11.5 MiB)


def network_kernel(x_ref, w1_ref, b1_ref, w2_ref, b2_ref, out_ref):
    # x:  (5, TB)  f32, batch on lanes
    # w1: (5, 5)   PyTorch layout (out_features, in_features)
    # b1: (5, 1)   column
    # w2: (5, 1)   = linear_output.weight.T
    # b2: (1, 1)
    x = x_ref[...]
    w1 = w1_ref[...]
    b1 = b1_ref[...]
    w2 = w2_ref[...]
    b2 = b2_ref[...]

    # h = W1 @ x + b1 as 5 unrolled rank-1 VPU FMAs (no MXU for a 5-wide K).
    h = w1[:, 0:1] * x[0:1, :]
    for k in range(1, _F):
        h = h + w1[:, k:k + 1] * x[k:k + 1, :]
    h = h + b1                                   # (5, TB)

    # Softmax over the 5 features (sublane axis), numerically stable.
    m = jnp.max(h, axis=0, keepdims=True)        # (1, TB)
    e = jnp.exp(h - m)                           # (5, TB)
    denom = jnp.sum(e, axis=0, keepdims=True)    # (1, TB)
    inv = 1.0 / denom                            # exact f32 reciprocal
    sf = e * inv                                 # (5, TB)

    # linear_output: weighted sum of the 5 h rows + bias.
    lin = jnp.sum(h * w2, axis=0, keepdims=True) + b2   # (1, TB)

    # Packed lane-dense output slab: rows 0..4 softmax, row 5 linear.
    out_ref[0:_F, :] = sf.astype(out_ref.dtype)
    out_ref[_F:_F + 1, :] = lin.astype(out_ref.dtype)


def _round_up(n, m):
    return pl.cdiv(n, m) * m


def network_forward_feature_major(xT, w1, b1, w2, b2, *, block_b=65536):
    """Feature-major fast path (no wrapper transposes).

    xT: (5, B) f32 (batch on the last axis).
    Weights in PyTorch layout: w1 (5,5), b1 (5,), w2 (1,5), b2 (1,).
    Returns (softmax (5, B), linear (1, B)).
    """
    F, B = xT.shape
    assert F == _F

    # Lanes per grid step: multiple of 128, clamped for VMEM.
    TB = min(int(block_b), _round_up(B, _LANE))
    TB = _round_up(max(TB, _LANE), _LANE)
    TB = min(TB, _MAX_TB)
    Bp = _round_up(B, TB)                        # padded batch
    if Bp != B:
        xT = jnp.pad(xT, ((0, 0), (0, Bp - B)))

    b1c = b1.reshape(_F, 1)
    w2c = w2.reshape(1, _F).T                    # (5, 1)
    b2c = b2.reshape(1, 1)

    const = lambda shape: pl.BlockSpec(shape, lambda i: (0, 0))
    # ~90 flops, 5 transcendentals, 44 bytes per sample (+ tiny weights).
    cost = pl.CostEstimate(
        flops=90 * Bp,
        transcendentals=5 * Bp,
        bytes_accessed=(2 * _F + 1) * 4 * Bp + 4 * (_F * _F + 2 * _F + 1),
    )

    packed = pl.pallas_call(
        network_kernel,
        out_shape=jax.ShapeDtypeStruct((_F + 1, Bp), jnp.float32),
        grid=(Bp // TB,),
        in_specs=[
            pl.BlockSpec((_F, TB), lambda i: (0, i)),  # x, tiled over batch lanes
            const((_F, _F)),                           # w1 (VMEM-resident)
            const((_F, 1)),                            # b1
            const((_F, 1)),                            # w2^T
            const((1, 1)),                             # b2
        ],
        out_specs=pl.BlockSpec((_F + 1, TB), lambda i: (0, i)),
        compiler_params=pltpu.CompilerParams(
            dimension_semantics=("parallel",),         # dual-TC sharding on v7x
            vmem_limit_bytes=32 * 1024 * 1024),
        cost_estimate=cost,
    )(xT, w1, b1c, w2c, b2c)

    return packed[:_F, :B], packed[_F:_F + 1, :B]


def network_forward(x, w1, b1, w2, b2, *, block_b=65536):
    """PyTorch-layout wrapper.  x: (B, 5) f32.
    Returns (softmax_out (B, 5), linear_out (B, 1)).

    Note: the x.T / output .T below are whole-tensor HBM passes; callers that
    can keep a feature-major layout should use network_forward_feature_major.
    """
    B, F = x.shape
    assert F == _F
    sfT, linT = network_forward_feature_major(x.T, w1, b1, w2, b2,
                                              block_b=block_b)
    return sfT.T, linT.T


def init_params(key):
    """Deterministic init mimicking nn.Linear default (uniform +/- 1/sqrt(fan_in)),
    stored in PyTorch layout: weight (out, in), bias (out,)."""
    k1, k2, k3, k4 = jax.random.split(key, 4)
    bound = 1.0 / jnp.sqrt(float(_F))
    w1 = jax.random.uniform(k1, (_F, _F), jnp.float32, -bound, bound)
    b1 = jax.random.uniform(k2, (_F,), jnp.float32, -bound, bound)
    w2 = jax.random.uniform(k3, (1, _F), jnp.float32, -bound, bound)
    b2 = jax.random.uniform(k4, (1,), jnp.float32, -bound, bound)
    return w1, b1, w2, b2


def reference_forward(x, w1, b1, w2, b2):
    h = x @ w1.T + b1
    sf = jax.nn.softmax(h, axis=1)
    lin = h @ w2.T + b2
    return sf, lin


if __name__ == "__main__":
    key = jax.random.PRNGKey(0)
    kx, kx2, kp = jax.random.split(key, 3)
    w1, b1, w2, b2 = init_params(kp)

    # Small shape consistent with the module: batch=8, features=5.
    B = 8
    x = jax.random.normal(kx, (B, _F), jnp.float32)
    sf_out, lin_out = network_forward(x, w1, b1, w2, b2)
    jax.block_until_ready((sf_out, lin_out))

    sf_ref, lin_ref = reference_forward(x, w1, b1, w2, b2)
    assert sf_out.shape == (B, _F) and lin_out.shape == (B, 1)
    assert jnp.allclose(sf_out, sf_ref, atol=1e-4, rtol=1e-4)
    assert jnp.allclose(lin_out, lin_ref, atol=1e-4, rtol=1e-4)

    # Exercise batch padding + a multi-step pipelined grid with a small tile.
    B2 = 300
    x2 = jax.random.normal(kx2, (B2, _F), jnp.float32)
    sf2, lin2 = network_forward(x2, w1, b1, w2, b2, block_b=128)
    jax.block_until_ready((sf2, lin2))
    sf2_ref, lin2_ref = reference_forward(x2, w1, b1, w2, b2)
    assert sf2.shape == (B2, _F) and lin2.shape == (B2, 1)
    assert jnp.allclose(sf2, sf2_ref, atol=1e-4, rtol=1e-4)
    assert jnp.allclose(lin2, lin2_ref, atol=1e-4, rtol=1e-4)

    # Feature-major fast path (no wrapper transposes) must agree too.
    sfT, linT = network_forward_feature_major(x2.T, w1, b1, w2, b2)
    jax.block_until_ready((sfT, linT))
    assert sfT.shape == (_F, B2) and linT.shape == (1, B2)
    assert jnp.allclose(sfT.T, sf2_ref, atol=1e-4, rtol=1e-4)
    assert jnp.allclose(linT.T, lin2_ref, atol=1e-4, rtol=1e-4)

    print("KERNEL_OK")
</pallas_src>

<mosaic_0001>
module attributes {stable_mosaic.version = 11 : i64} {
  func.func @network_kernel(%arg0: i32, %arg1: memref<5x128xf32, #tpu.memory_space<vmem>>, %arg2: memref<5x5xf32, #tpu.memory_space<vmem>>, %arg3: memref<5x1xf32, #tpu.memory_space<vmem>>, %arg4: memref<5x1xf32, #tpu.memory_space<vmem>>, %arg5: memref<1x1xf32, #tpu.memory_space<vmem>>, %arg6: memref<6x128xf32, #tpu.memory_space<vmem>>) attributes {dimension_semantics = [#tpu.dimension_semantics<parallel>], iteration_bounds = array<i64: 1>, scalar_prefetch = 0 : i64, scratch_operands = 0 : i64, tpu.core_type = #tpu.core_type<tc>, window_params = [{transform_indices = @transform_0, window_bounds = array<i64: 5, 128>}, {pipeline_mode = #tpu.pipeline_mode<synchronous>, transform_indices = @transform_1, window_bounds = array<i64: 5, 5>}, {pipeline_mode = #tpu.pipeline_mode<synchronous>, transform_indices = @transform_2, window_bounds = array<i64: 5, 1>}, {pipeline_mode = #tpu.pipeline_mode<synchronous>, transform_indices = @transform_3, window_bounds = array<i64: 5, 1>}, {pipeline_mode = #tpu.pipeline_mode<synchronous>, transform_indices = @transform_4, window_bounds = array<i64: 1, 1>}, {transform_indices = @transform_5, window_bounds = array<i64: 6, 128>}]} {
    %c0 = arith.constant 0 : index
    %c0_0 = arith.constant 0 : index
    %0 = vector.load %arg1[%c0, %c0_0] : memref<5x128xf32, #tpu.memory_space<vmem>>, vector<5x128xf32>
    %c0_1 = arith.constant 0 : index
    %c0_2 = arith.constant 0 : index
    %1 = vector.load %arg2[%c0_1, %c0_2] : memref<5x5xf32, #tpu.memory_space<vmem>>, vector<5x5xf32>
    %c0_3 = arith.constant 0 : index
    %c0_4 = arith.constant 0 : index
    %2 = vector.load %arg3[%c0_3, %c0_4] : memref<5x1xf32, #tpu.memory_space<vmem>>, vector<5x1xf32>
    %c0_5 = arith.constant 0 : index
    %c0_6 = arith.constant 0 : index
    %3 = vector.load %arg4[%c0_5, %c0_6] : memref<5x1xf32, #tpu.memory_space<vmem>>, vector<5x1xf32>
    %c0_7 = arith.constant 0 : index
    %c0_8 = arith.constant 0 : index
    %4 = vector.load %arg5[%c0_7, %c0_8] : memref<1x1xf32, #tpu.memory_space<vmem>>, vector<1x1xf32>
    %5 = vector.extract_strided_slice %1 {offsets = [0, 0], sizes = [5, 1], strides = [1, 1]} : vector<5x5xf32> to vector<5x1xf32>
    %6 = vector.extract_strided_slice %0 {offsets = [0, 0], sizes = [1, 128], strides = [1, 1]} : vector<5x128xf32> to vector<1x128xf32>
    %7 = vector.broadcast %5 : vector<5x1xf32> to vector<5x128xf32>
    %8 = vector.broadcast %6 : vector<1x128xf32> to vector<5x128xf32>
    %9 = arith.mulf %7, %8 : vector<5x128xf32>
    %10 = vector.extract_strided_slice %1 {offsets = [0, 1], sizes = [5, 1], strides = [1, 1]} : vector<5x5xf32> to vector<5x1xf32>
    %11 = vector.extract_strided_slice %0 {offsets = [1, 0], sizes = [1, 128], strides = [1, 1]} : vector<5x128xf32> to vector<1x128xf32>
    %12 = vector.broadcast %10 : vector<5x1xf32> to vector<5x128xf32>
    %13 = vector.broadcast %11 : vector<1x128xf32> to vector<5x128xf32>
    %14 = arith.mulf %12, %13 : vector<5x128xf32>
    %15 = arith.addf %9, %14 : vector<5x128xf32>
    %16 = vector.extract_strided_slice %1 {offsets = [0, 2], sizes = [5, 1], strides = [1, 1]} : vector<5x5xf32> to vector<5x1xf32>
    %17 = vector.extract_strided_slice %0 {offsets = [2, 0], sizes = [1, 128], strides = [1, 1]} : vector<5x128xf32> to vector<1x128xf32>
    %18 = vector.broadcast %16 : vector<5x1xf32> to vector<5x128xf32>
    %19 = vector.broadcast %17 : vector<1x128xf32> to vector<5x128xf32>
    %20 = arith.mulf %18, %19 : vector<5x128xf32>
    %21 = arith.addf %15, %20 : vector<5x128xf32>
    %22 = vector.extract_strided_slice %1 {offsets = [0, 3], sizes = [5, 1], strides = [1, 1]} : vector<5x5xf32> to vector<5x1xf32>
    %23 = vector.extract_strided_slice %0 {offsets = [3, 0], sizes = [1, 128], strides = [1, 1]} : vector<5x128xf32> to vector<1x128xf32>
    %24 = vector.broadcast %22 : vector<5x1xf32> to vector<5x128xf32>
    %25 = vector.broadcast %23 : vector<1x128xf32> to vector<5x128xf32>
    %26 = arith.mulf %24, %25 : vector<5x128xf32>
    %27 = arith.addf %21, %26 : vector<5x128xf32>
    %28 = vector.extract_strided_slice %1 {offsets = [0, 4], sizes = [5, 1], strides = [1, 1]} : vector<5x5xf32> to vector<5x1xf32>
    %29 = vector.extract_strided_slice %0 {offsets = [4, 0], sizes = [1, 128], strides = [1, 1]} : vector<5x128xf32> to vector<1x128xf32>
    %30 = vector.broadcast %28 : vector<5x1xf32> to vector<5x128xf32>
    %31 = vector.broadcast %29 : vector<1x128xf32> to vector<5x128xf32>
    %32 = arith.mulf %30, %31 : vector<5x128xf32>
    %33 = arith.addf %27, %32 : vector<5x128xf32>
    %34 = vector.broadcast %2 : vector<5x1xf32> to vector<5x128xf32>
    %35 = arith.addf %33, %34 : vector<5x128xf32>
    %cst = arith.constant dense<0xFF800000> : vector<128xf32>
    %36 = vector.multi_reduction <maximumf>, %35, %cst [0] : vector<5x128xf32> to vector<128xf32>
    %37 = vector.shape_cast %36 : vector<128xf32> to vector<1x128xf32>
    %38 = vector.broadcast %37 : vector<1x128xf32> to vector<5x128xf32>
    %39 = arith.subf %35, %38 : vector<5x128xf32>
    %40 = math.exp %39 : vector<5x128xf32>
    %cst_9 = arith.constant dense<0.000000e+00> : vector<128xf32>
    %41 = vector.multi_reduction <add>, %40, %cst_9 [0] : vector<5x128xf32> to vector<128xf32>
    %42 = vector.shape_cast %41 : vector<128xf32> to vector<1x128xf32>
    %cst_10 = arith.constant 1.000000e+00 : f32
    %43 = vector.broadcast %cst_10 : f32 to vector<1x128xf32>
    %44 = arith.divf %43, %42 : vector<1x128xf32>
    %45 = vector.broadcast %44 : vector<1x128xf32> to vector<5x128xf32>
    %46 = arith.mulf %40, %45 : vector<5x128xf32>
    %47 = vector.broadcast %3 : vector<5x1xf32> to vector<5x128xf32>
    %48 = arith.mulf %35, %47 : vector<5x128xf32>
    %cst_11 = arith.constant dense<0.000000e+00> : vector<128xf32>
    %49 = vector.multi_reduction <add>, %48, %cst_11 [0] : vector<5x128xf32> to vector<128xf32>
    %50 = vector.shape_cast %49 : vector<128xf32> to vector<1x128xf32>
    %51 = vector.broadcast %4 : vector<1x1xf32> to vector<1x128xf32>
    %52 = arith.addf %50, %51 : vector<1x128xf32>
    %c0_12 = arith.constant 0 : index
    %c0_13 = arith.constant 0 : index
    %53 = vector.load %arg6[%c0_12, %c0_13] : memref<6x128xf32, #tpu.memory_space<vmem>>, vector<5x128xf32>
    tpu.vector_store %arg6[%c0_12, %c0_13], %46 {strides = array<i32>} : memref<6x128xf32, #tpu.memory_space<vmem>>, vector<5x128xf32>,
    %c5 = arith.constant 5 : index
    %c0_14 = arith.constant 0 : index
    %54 = vector.load %arg6[%c5, %c0_14] : memref<6x128xf32, #tpu.memory_space<vmem>>, vector<1x128xf32>
    tpu.vector_store %arg6[%c5, %c0_14], %52 {strides = array<i32>} : memref<6x128xf32, #tpu.memory_space<vmem>>, vector<1x128xf32>,
    return
  }
  func.func @transform_0(%arg0: i32) -> (i32, i32) {
    %c0_i32 = arith.constant 0 : i32
    %c0_i32_0 = arith.constant 0 : i32
    return %c0_i32, %arg0 : i32, i32
  }
  func.func @transform_1(%arg0: i32) -> (i32, i32) {
    %c0_i32 = arith.constant 0 : i32
    %c0_i32_0 = arith.constant 0 : i32
    %c0_i32_1 = arith.constant 0 : i32
    return %c0_i32, %c0_i32_0 : i32, i32
  }
  func.func @transform_2(%arg0: i32) -> (i32, i32) {
    %c0_i32 = arith.constant 0 : i32
    %c0_i32_0 = arith.constant 0 : i32
    %c0_i32_1 = arith.constant 0 : i32
    return %c0_i32, %c0_i32_0 : i32, i32
  }
  func.func @transform_3(%arg0: i32) -> (i32, i32) {
    %c0_i32 = arith.constant 0 : i32
    %c0_i32_0 = arith.constant 0 : i32
    %c0_i32_1 = arith.constant 0 : i32
    return %c0_i32, %c0_i32_0 : i32, i32
  }
  func.func @transform_4(%arg0: i32) -> (i32, i32) {
    %c0_i32 = arith.constant 0 : i32
    %c0_i32_0 = arith.constant 0 : i32
    %c0_i32_1 = arith.constant 0 : i32
    return %c0_i32, %c0_i32_0 : i32, i32
  }
  func.func @transform_5(%arg0: i32) -> (i32, i32) {
    %c0_i32 = arith.constant 0 : i32
    %c0_i32_0 = arith.constant 0 : i32
    return %c0_i32, %arg0 : i32, i32
  }
}

</mosaic_0001>

<llo_original>
// kernel: tpu_custom_call.1
$region0: #{tpu_custom_call.1}
  #allocation0 [shape = 'u32[]', space=smem, size = 0x4, offset = 0x4, fixed_abs, tag = 'smem constant byte address 0x4 - core index']
  #allocation1 [shape = 'u32[144,128]{1,0:T(1,128)}', space=vmem, size = 0x12000, scoped, tag = 'internal scratch']
  #allocation2 [shape = 'f32[1,1]{1,0:T(1,128)S(1)}', space=vmem, size = 0x200, scoped, tag = 'scoped memory for tpu_custom_call.1']
  %s0 = inlined_call_operand.vmem [shape: f32[5,128], index: 0, kind: input, shape index: {}]
  %s1 = inlined_call_operand.vmem [shape: f32[5,5], index: 1, kind: input, shape index: {}]
  %s2 = inlined_call_operand.vmem [shape: f32[5,1], index: 2, kind: input, shape index: {}]
  %s3 = inlined_call_operand.vmem [shape: f32[5,1], index: 3, kind: input, shape index: {}]
  %s4 = inlined_call_operand.<no memory space> [shape: f32[1,1], index: 4, kind: input, shape index: {}]
  %s5 = inlined_call_operand.hbm [shape: f32[6,128], index: 5, kind: output, shape index: {}]
  %s6 = sld [smem:[#allocation0]]
  $region30: #{tpu_custom_call.1} parent=0
    _
  %s8 = ssub.s32 1, %s6
  %s9 = scalar_select 0, %s8, %s6
  %v10 = vstv %s4
  %11 = vst [vmem:[#allocation2] sm:$0x1] %v10
  $region1: #{tpu_custom_call.1} parent=0
    #allocation3 [shape = 'u8[4096]{0}', space=vmem, size = 0x1000, scoped, tag = 'output window, operand 0, single buffered']
    #allocation4 [shape = 's32[1]{0}', space=sflag, size = 0x4, scoped, tag = 'scoped memory for tpu_custom_call.1']
    %12 = vsyncpa [#allocation4], 0
    // Predicated region
    $region2: #{tpu_custom_call.1} parent=1 // pred_check
      _
    $region3: #{tpu_custom_call.1} parent=1 // pred_check_branch
      %14 = sbr.rel (0) target = $region5
    $region4: #{tpu_custom_call.1} parent=1 // pred_region
      _
    $region5: #{tpu_custom_call.1} parent=1 // pred_fallthru
      _
    // Predicated region
    $region6: #{tpu_custom_call.1} parent=1 // pred_check
      _
    $region7: #{tpu_custom_call.1} parent=1 // pred_check_branch
      %16 = sbr.rel (0) target = $region9
    $region8: #{tpu_custom_call.1} parent=1 // pred_region
      _
    $region9: #{tpu_custom_call.1} parent=1 // pred_fallthru
      _
    // Predicated region
    $region10: #{tpu_custom_call.1} parent=1 // pred_check
      _
    $region11: #{tpu_custom_call.1} parent=1 // pred_check_branch
      %18 = sbr.rel (0) target = $region13
    $region12: #{tpu_custom_call.1} parent=1 // pred_region
      _
    $region13: #{tpu_custom_call.1} parent=1 // pred_fallthru
      _
    // Predicated region
    $region14: #{tpu_custom_call.1} parent=1 // pred_check
      _
    $region15: #{tpu_custom_call.1} parent=1 // pred_check_branch
      %20 = sbr.rel (0) target = $region17
    $region16: #{tpu_custom_call.1} parent=1 // pred_region
      _
    $region17: #{tpu_custom_call.1} parent=1 // pred_fallthru
      _
    // Predicated region
    $region18: #{tpu_custom_call.1} parent=1 // pred_check
      _
    $region19: #{tpu_custom_call.1} parent=1 // pred_check_branch
      %22 = sbr.rel (0) target = $region21
    $region20: #{tpu_custom_call.1} parent=1 // pred_region
      _
    $region21: #{tpu_custom_call.1} parent=1 // pred_fallthru
      _
    %v23 = vld [vmem:[%s0] sm:$0x1f]
    %v24 = vld [vmem:[%s1] sm:$0x1f]
    %v25 = vld [vmem:[%s2] sm:$0x1f]
    %v26 = vld [vmem:[%s3] sm:$0x1f]
    %v27 = vld [vmem:[#allocation2] sm:$0x1]
    %29 = vset.pattern.permute.xlu0 0
    %30 = vperm.xlu0 %29, %v24
    %v31 = vpop.permute.xlu0 %30
    %v33 = vlaneseq
    %v34 = vshrl.u32 %v33, 7
    %v35 = vsub.s32 0, %v34
    %v36 = vrot.slane %v23, %v35
    %v37 = vmul.f32 %v31, %v36
    %38 = vset.pattern.permute.xlu0 1
    %39 = vperm.xlu0 %38, %v24
    %v40 = vpop.permute.xlu0 %39
    %v42 = vlaneseq
    %v43 = vshrl.u32 %v42, 7
    %v44 = vsub.s32 1, %v43
    %v45 = vrot.slane %v23, %v44
    %v46 = vmul.f32 %v40, %v45
    %v47 = vadd.f32 %v37, %v46
    %48 = vset.pattern.permute.xlu0 2
    %49 = vperm.xlu0 %48, %v24
    %v50 = vpop.permute.xlu0 %49
    %v52 = vlaneseq
    %v53 = vshrl.u32 %v52, 7
    %v54 = vsub.s32 2, %v53
    %v55 = vrot.slane %v23, %v54
    %v56 = vmul.f32 %v50, %v55
    %v57 = vadd.f32 %v47, %v56
    %58 = vset.pattern.permute.xlu0 3
    %59 = vperm.xlu0 %58, %v24
    %v60 = vpop.permute.xlu0 %59
    %v62 = vlaneseq
    %v63 = vshrl.u32 %v62, 7
    %v64 = vsub.s32 3, %v63
    %v65 = vrot.slane %v23, %v64
    %v66 = vmul.f32 %v60, %v65
    %v67 = vadd.f32 %v57, %v66
    %68 = vset.pattern.permute.xlu0 4
    %69 = vperm.xlu0 %68, %v24
    %v70 = vpop.permute.xlu0 %69
    %v72 = vlaneseq
    %v73 = vshrl.u32 %v72, 7
    %v74 = vsub.s32 4, %v73
    %v75 = vrot.slane %v23, %v74
    %v76 = vmul.f32 %v70, %v75
    %v77 = vadd.f32 %v67, %v76
    %79 = vset.pattern.permute.xlu0 0
    %80 = vperm.xlu0 %79, %v25
    %v81 = vpop.permute.xlu0 %80
    %v83 = vadd.f32 %v77, %v81
    %vm84 = vcmask 1044480
    %v85 = vsel %vm84, %v83, -inf
    %v86 = vrot.slane %v85, 4
    %v87 = vmax.f32 %v85, %v86
    %v88 = vrot.slane %v87, 2
    %v89 = vmax.f32 %v87, %v88
    %v90 = vrot.slane %v89, 1
    %v91 = vmax.f32 %v89, %v90
    %v92 = vsub.f32 %v83, %v91
    %v93 = vmul.f32 %v92, 1.442695
    %v94 = vpow.pop %v93
    %v95 = vsel %vm84, %v94, 0.0
    %v96 = vrot.slane %v95, 4
    %v97 = vadd.f32 %v95, %v96
    %v98 = vrot.slane %v97, 2
    %v99 = vadd.f32 %v97, %v98
    %v100 = vrot.slane %v99, 1
    %v101 = vadd.f32 %v99, %v100
    %v102 = vrcp.pop %v101
    %v103 = vmul.f32 1.0, %v102
    %v104 = vmul.f32 %v94, %v103
    %106 = vset.pattern.permute.xlu0 0
    %107 = vperm.xlu0 %106, %v26
    %v108 = vpop.permute.xlu0 %107
    %v110 = vmul.f32 %v83, %v108
    %v111 = vsel %vm84, %v110, 0.0
    %v112 = vrot.slane %v111, 4
    %v113 = vadd.f32 %v111, %v112
    %v114 = vrot.slane %v113, 2
    %v115 = vadd.f32 %v113, %v114
    %v116 = vrot.slane %v115, 1
    %v117 = vadd.f32 %v115, %v116
    %119 = vset.pattern.permute.xlu0 0
    %120 = vperm.xlu0 %119, %v27
    %v121 = vpop.permute.xlu0 %120
    %v123 = vlaneseq
    %v124 = vshrl.u32 %v123, 7
    %v125 = vsub.s32 0, %v124
    %v126 = vrot.slane %v121, %v125
    %v127 = vadd.f32 %v117, %v126
    %128 = vst [vmem:[#allocation3] sm:$0x1f] %v104
    %129 = vst [vmem:[#allocation3 + $0x5] sm:$0x1] %v127
    // Predicated region
    $region22: #{tpu_custom_call.1} parent=1 // pred_check
      _
    $region23: #{tpu_custom_call.1} parent=1 // pred_check_branch
      %131 = sbr.rel (0) target = $region25
    $region24: #{tpu_custom_call.1} parent=1 // pred_region
      %s133 = ssub.s32 128, 128
      %134 = vsyncadd [#allocation4], %s133
      %s136 = sshll.u32 [#allocation3], 4
      %s137 = int_to_ptr.vmem [resolvable:$true] %s136
      %139 = dma.vmem_to_hbm [thread:$0]  %s137, 128, %s5, [#allocation4]
    $region25: #{tpu_custom_call.1} parent=1 // pred_fallthru
      _
    // Predicated region
    $region26: #{tpu_custom_call.1} parent=1 // pred_check
      _
    $region27: #{tpu_custom_call.1} parent=1 // pred_check_branch
      %141 = sbr.rel (0) target = $region29
    $region28: #{tpu_custom_call.1} parent=1 // pred_region
      %142 = dma.done [#allocation4], 128
    $region29: #{tpu_custom_call.1} parent=1 // pred_fallthru
      _
    %143 = vsyncpa [#allocation4], 1

</llo_original>
